<compile_context>
chip_gen: v7x
topology: tpu7x:2x2x1
jax: 0.10.0
libtpu: 0.0.40
codegen_flags: <defaults>
</compile_context>

<pallas_src>
import functools
import math

import jax
import jax.numpy as jnp
from jax import lax
from jax.experimental import pallas as pl
from jax.experimental.pallas import tpu as pltpu


# Matmul operand dtype.  Kept f32 here for exact parity with the f32 reference
# at these toy shapes; set to jnp.bfloat16 for v6e/v7x production (MXU-native,
# halves HBM/VMEM traffic).  Accumulation / LN / softmax statistics stay f32.
COMPUTE_DTYPE = jnp.float32

# Scoped VMEM limit.  32 MiB is safe on v5e/v6e/v7x; re-derive block sizes
# against 64 MiB physical VMEM when targeting v7x at production shapes.
VMEM_LIMIT = 32 * 1024 * 1024


def _cparams(n_grid_axes):
    kw = dict(vmem_limit_bytes=VMEM_LIMIT)
    if n_grid_axes:
        kw["dimension_semantics"] = ("parallel",) * n_grid_axes
    return pltpu.CompilerParams(**kw)


def _row_tile(n, target=512):
    """Largest row tile <= target that divides n (multiple of 8 if tiled)."""
    if n <= target:
        return n
    for t in range(target, 7, -1):
        if n % t == 0 and t % 8 == 0:
            return t
    return n


# ------------------------------ in-kernel helpers ---------------------------

def _mm(a, b):
    return jnp.dot(a.astype(COMPUTE_DTYPE), b.astype(COMPUTE_DTYPE),
                   preferred_element_type=jnp.float32)


def _ln(x, g, b, eps):
    m = jnp.mean(x, axis=-1, keepdims=True)
    v = jnp.mean((x - m) ** 2, axis=-1, keepdims=True)
    return (x - m) * lax.rsqrt(v + eps) * g + b


def _silu(x):
    return x * jax.nn.sigmoid(x)


# ----------------------- kernel 1/6: LN + FFN + residual ---------------------

def _ffn_core(x, g, b, w1, b1, w2, b2, eps, scale):
    xn = _ln(x, g, b, eps)
    h = _silu(_mm(xn, w1) + b1)
    return x + scale * (_mm(h, w2) + b2)


def _ln_ffn_kernel(x_ref, g_ref, b_ref, w1_ref, b1_ref, w2_ref, b2_ref, o_ref,
                   *, eps, scale):
    o_ref[...] = _ffn_core(x_ref[...], g_ref[...], b_ref[...], w1_ref[...],
                           b1_ref[...], w2_ref[...], b2_ref[...], eps, scale)


def _ln_ffn_final_ln_kernel(x_ref, g_ref, b_ref, w1_ref, b1_ref, w2_ref, b2_ref,
                            gf_ref, bf_ref, o_ref, *, eps, scale):
    y = _ffn_core(x_ref[...], g_ref[...], b_ref[...], w1_ref[...],
                  b1_ref[...], w2_ref[...], b2_ref[...], eps, scale)
    o_ref[...] = _ln(y, gf_ref[...], bf_ref[...], eps)


def ln_ffn(x2d, gamma, beta, w1, b1, w2, b2, scale,
           final_gamma=None, final_beta=None, eps=1e-5):
    N, D = x2d.shape
    F = w1.shape[1]
    tn = _row_tile(N)
    row_spec = pl.BlockSpec((tn, D), lambda i: (i, 0))
    fixed = lambda r, c: pl.BlockSpec((r, c), lambda i: (0, 0))
    args = [x2d, gamma.reshape(1, -1), beta.reshape(1, -1),
            w1, b1.reshape(1, -1), w2, b2.reshape(1, -1)]
    in_specs = [row_spec, fixed(1, D), fixed(1, D),
                fixed(D, F), fixed(1, F), fixed(F, D), fixed(1, D)]
    if final_gamma is None:
        kernel = functools.partial(_ln_ffn_kernel, eps=eps, scale=scale)
    else:
        kernel = functools.partial(_ln_ffn_final_ln_kernel, eps=eps, scale=scale)
        args += [final_gamma.reshape(1, -1), final_beta.reshape(1, -1)]
        in_specs += [fixed(1, D), fixed(1, D)]
    return pl.pallas_call(
        kernel,
        grid=(N // tn,),
        in_specs=in_specs,
        out_specs=row_spec,
        out_shape=jax.ShapeDtypeStruct((N, D), jnp.float32),
        compiler_params=_cparams(1),
    )(*args)


# ----------------------- kernel 2: LN + packed QKV ---------------------------

def _ln_qkv_kernel(x_ref, g_ref, b_ref, w_ref, bqkv_ref, o_ref, *, eps):
    xn = _ln(x_ref[...], g_ref[...], b_ref[...], eps)
    o_ref[...] = _mm(xn, w_ref[...]) + bqkv_ref[...]


def ln_qkv(x2d, gamma, beta, wqkv, bqkv, eps=1e-5):
    N, D = x2d.shape
    O = wqkv.shape[1]
    tn = _row_tile(N)
    return pl.pallas_call(
        functools.partial(_ln_qkv_kernel, eps=eps),
        grid=(N // tn,),
        in_specs=[pl.BlockSpec((tn, D), lambda i: (i, 0)),
                  pl.BlockSpec((1, D), lambda i: (0, 0)),
                  pl.BlockSpec((1, D), lambda i: (0, 0)),
                  pl.BlockSpec((D, O), lambda i: (0, 0)),
                  pl.BlockSpec((1, O), lambda i: (0, 0))],
        out_specs=pl.BlockSpec((tn, O), lambda i: (i, 0)),
        out_shape=jax.ShapeDtypeStruct((N, O), jnp.float32),
        compiler_params=_cparams(1),
    )(x2d, gamma.reshape(1, -1), beta.reshape(1, -1), wqkv, bqkv.reshape(1, -1))


# ----------------------- kernel 3: positional projection ---------------------

def _matmul_kernel(x_ref, w_ref, o_ref):
    o_ref[...] = _mm(x_ref[...], w_ref[...])


def matmul_nobias(x2d, w):
    return pl.pallas_call(
        _matmul_kernel,
        out_shape=jax.ShapeDtypeStruct((x2d.shape[0], w.shape[1]), jnp.float32),
        compiler_params=_cparams(0),
    )(x2d, w)


# -------------- kernel 4: fused rel-pos MHA + out-proj + residual ------------

def _rel_attn_kernel(qkv_ref, pe_ref, pbu_ref, pbv_ref, res_ref, wo_ref, bo_ref,
                     o_ref, *, H, dk, T, scale):
    D = H * dk
    acc = res_ref[0] + bo_ref[...]                     # (T, D): residual + out bias
    for h in range(H):                                 # small static head loop
        c0 = h * dk
        q_h = qkv_ref[0, :, c0:c0 + dk]                # (T, dk)
        k_h = qkv_ref[0, :, D + c0:D + c0 + dk]        # (T, dk)
        v_h = qkv_ref[0, :, 2 * D + c0:2 * D + c0 + dk]
        pe_h = pe_ref[:, c0:c0 + dk]                   # (2T-1, dk)
        qu = q_h + pbu_ref[:, c0:c0 + dk]
        qv = q_h + pbv_ref[:, c0:c0 + dk]
        # content score (MXU): (T, T)
        ac = lax.dot_general(qu.astype(COMPUTE_DTYPE), k_h.astype(COMPUTE_DTYPE),
                             (((1,), (1,)), ((), ())),
                             preferred_element_type=jnp.float32)
        # positional score (MXU): (T, 2T-1) — NO (H,T,T,dk) gather tensor
        bd_full = lax.dot_general(qv.astype(COMPUTE_DTYPE), pe_h.astype(COMPUTE_DTYPE),
                                  (((1,), (1,)), ((), ())),
                                  preferred_element_type=jnp.float32)
        # rel_shift: bd[i, j] = bd_full[i, (T-1) + j - i] — static per-row band
        # extraction inside the kernel.  (For production T, switch to
        # pltpu.roll(..., stride=1) or flash-style key/rel tiling.)
        rows = [bd_full[i:i + 1, T - 1 - i:2 * T - 1 - i] for i in range(T)]
        bd = jnp.concatenate(rows, axis=0)             # (T, T)
        s = (ac + bd) * scale
        s = s - jnp.max(s, axis=-1, keepdims=True)
        e = jnp.exp(s)
        attn = e * pl.reciprocal(jnp.sum(e, axis=-1, keepdims=True), approx=True)
        ctx = _mm(attn, v_h)                           # (T, dk)
        # fused output projection: ctx @ Wo decomposes as sum_h ctx_h @ Wo[h-rows]
        acc = acc + _mm(ctx, wo_ref[c0:c0 + dk, :])
    o_ref[0] = acc


def rel_attention_fused(qkv, pe_proj, pbu, pbv, res, wo, bo, H, dk):
    B, T, D3 = qkv.shape
    D = H * dk
    L = 2 * T - 1
    return pl.pallas_call(
        functools.partial(_rel_attn_kernel, H=H, dk=dk, T=T,
                          scale=1.0 / math.sqrt(dk)),
        grid=(B,),
        in_specs=[
            pl.BlockSpec((1, T, D3), lambda b: (b, 0, 0)),   # packed qkv
            pl.BlockSpec((L, D), lambda b: (0, 0)),          # projected pos emb
            pl.BlockSpec((1, D), lambda b: (0, 0)),          # pos_bias_u
            pl.BlockSpec((1, D), lambda b: (0, 0)),          # pos_bias_v
            pl.BlockSpec((1, T, D), lambda b: (b, 0, 0)),    # residual
            pl.BlockSpec((D, D), lambda b: (0, 0)),          # Wo
            pl.BlockSpec((1, D), lambda b: (0, 0)),          # bo
        ],
        out_specs=pl.BlockSpec((1, T, D), lambda b: (b, 0, 0)),
        out_shape=jax.ShapeDtypeStruct((B, T, D), jnp.float32),
        compiler_params=_cparams(1),
    )(qkv, pe_proj, pbu, pbv, res, wo, bo.reshape(1, -1))


# ----------------- kernel 5: fused convolution module + residual -------------

def _conv_module_kernel(x_ref, g_ref, b_ref, wa_ref, ba_ref, wg_ref, bg_ref,
                        dw_ref, dwb_ref, w2_ref, b2_ref, o_ref, *, eps, K, T):
    x = x_ref[0]                                       # (T, D): also the residual
    xn = _ln(x, g_ref[...], b_ref[...], eps)
    a = _mm(xn, wa_ref[...]) + ba_ref[...]             # pw conv1, value half
    g = _mm(xn, wg_ref[...]) + bg_ref[...]             # pw conv1, gate half
    h = a * jax.nn.sigmoid(g)                          # GLU
    pad = (K - 1) // 2
    zeros = jnp.zeros((pad, h.shape[1]), h.dtype)
    hp = jnp.concatenate([zeros, h, zeros], axis=0)    # in-kernel halo (T+K-1, D)
    dw = jnp.zeros_like(h)
    for k in range(K):                                 # small static tap unroll
        dw = dw + hp[k:k + T, :] * dw_ref[k:k + 1, :]
    dw = _silu(dw + dwb_ref[...])
    # BatchNorm1d output is discarded by the reference forward -> no-op here.
    y = _mm(dw, w2_ref[...]) + b2_ref[...]             # pw conv2
    o_ref[0] = x + y


def conv_module(x3d, p, eps=1e-5):
    B, T, D = x3d.shape
    K = p["dw_w"].shape[0]
    # Split the GLU weight in the wrapper: two lane-dense (D, D) matmuls.
    wa, wg = p["pw1_w"][:, :D], p["pw1_w"][:, D:]
    ba, bg = p["pw1_b"][:D], p["pw1_b"][D:]
    fixed = lambda r, c: pl.BlockSpec((r, c), lambda b: (0, 0))
    return pl.pallas_call(
        functools.partial(_conv_module_kernel, eps=eps, K=K, T=T),
        grid=(B,),
        in_specs=[
            pl.BlockSpec((1, T, D), lambda b: (b, 0, 0)),
            fixed(1, D), fixed(1, D),      # LN gamma / beta
            fixed(D, D), fixed(1, D),      # pw1 value half
            fixed(D, D), fixed(1, D),      # pw1 gate half
            fixed(K, D), fixed(1, D),      # depthwise weight / bias
            fixed(D, D), fixed(1, D),      # pw2
        ],
        out_specs=pl.BlockSpec((1, T, D), lambda b: (b, 0, 0)),
        out_shape=jax.ShapeDtypeStruct((B, T, D), jnp.float32),
        compiler_params=_cparams(1),
    )(x3d, p["ln_conv_g"].reshape(1, -1), p["ln_conv_b"].reshape(1, -1),
      wa, ba.reshape(1, -1), wg, bg.reshape(1, -1),
      p["dw_w"], p["dw_b"].reshape(1, -1), p["pw2_w"], p["pw2_b"].reshape(1, -1))


# ------------------------- Conformer layer (wrapper) ------------------------

def conformer_layer(x, pos_emb, p, H, dk, eps=1e-5):
    B, T, D = x.shape
    N = B * T
    x2 = x.reshape(N, D)
    pe = pos_emb[0]                                                  # (2T-1, D)

    # 1. macaron feed-forward: x += 0.5 * FFN(LN(x))           (one fused kernel)
    x2 = ln_ffn(x2, p["ln_ffm_g"], p["ln_ffm_b"],
                p["ffm_w1"], p["ffm_b1"], p["ffm_w2"], p["ffm_b2"], 0.5, eps=eps)

    # 2. relative-position multi-head self-attention
    wqkv = jnp.concatenate([p["wq"], p["wk"], p["wv"]], axis=1)      # (D, 3D)
    bqkv = jnp.concatenate([p["bq"], p["bk"], p["bv"]], axis=0)      # (3D,)
    qkv = ln_qkv(x2, p["ln_mha_g"], p["ln_mha_b"], wqkv, bqkv, eps=eps)
    pe_proj = matmul_nobias(pe, p["wpos"])                           # (2T-1, D)
    x3 = rel_attention_fused(qkv.reshape(B, T, 3 * D), pe_proj,
                             p["pos_bias_u"].reshape(1, D),
                             p["pos_bias_v"].reshape(1, D),
                             x2.reshape(B, T, D), p["wo"], p["bo"], H, dk)
    x2 = x3.reshape(N, D)

    # 3. convolution module (LN + GLU + depthwise + SiLU + pw2 + residual)
    x2 = conv_module(x2.reshape(B, T, D), p, eps=eps).reshape(N, D)

    # 4. feed-forward + final layer norm                       (one fused kernel)
    x2 = ln_ffn(x2, p["ln_ff_g"], p["ln_ff_b"],
                p["ff_w1"], p["ff_b1"], p["ff_w2"], p["ff_b2"], 0.5,
                final_gamma=p["ln_final_g"], final_beta=p["ln_final_b"], eps=eps)
    return x2.reshape(B, T, D)


# ----------------------------- pure-JAX reference ---------------------------

def reference_forward(x, pos_emb, p, H, dk, eps=1e-5):
    def ln(a, g, b):
        m = a.mean(-1, keepdims=True)
        v = ((a - m) ** 2).mean(-1, keepdims=True)
        return (a - m) / jnp.sqrt(v + eps) * g + b

    def silu(a):
        return a * jax.nn.sigmoid(a)

    B, T, D = x.shape
    res = x
    xn = ln(x, p["ln_ffm_g"], p["ln_ffm_b"])
    x = res + 0.5 * (silu(xn @ p["ffm_w1"] + p["ffm_b1"]) @ p["ffm_w2"] + p["ffm_b2"])

    res = x
    xn = ln(x, p["ln_mha_g"], p["ln_mha_b"])
    q = xn @ p["wq"] + p["bq"]
    k = xn @ p["wk"] + p["bk"]
    v = xn @ p["wv"] + p["bv"]
    pe = pos_emb[0] @ p["wpos"]
    qh = q.reshape(B, T, H, dk).transpose(0, 2, 1, 3)
    kh = k.reshape(B, T, H, dk).transpose(0, 2, 1, 3)
    vh = v.reshape(B, T, H, dk).transpose(0, 2, 1, 3)
    qu = qh + p["pos_bias_u"][None, :, None, :]
    qv = qh + p["pos_bias_v"][None, :, None, :]
    ph = pe.reshape(2 * T - 1, H, dk).transpose(1, 0, 2)
    rel_idx = (T - 1) + jnp.arange(T)[None, :] - jnp.arange(T)[:, None]
    prel = ph[:, rel_idx, :]
    ac = jnp.einsum("bhid,bhjd->bhij", qu, kh)
    bd = jnp.einsum("bhid,hijd->bhij", qv, prel)
    attn = jax.nn.softmax((ac + bd) / math.sqrt(dk), axis=-1)
    ctx = jnp.einsum("bhij,bhjd->bhid", attn, vh).transpose(0, 2, 1, 3).reshape(B, T, D)
    x = res + (ctx @ p["wo"] + p["bo"])

    res = x
    xn = ln(x, p["ln_conv_g"], p["ln_conv_b"])
    h = xn @ p["pw1_w"] + p["pw1_b"]
    h = h[..., :D] * jax.nn.sigmoid(h[..., D:])
    K = p["dw_w"].shape[0]
    pad = (K - 1) // 2
    hp = jnp.pad(h, ((0, 0), (pad, pad), (0, 0)))
    dw = jnp.zeros_like(h)
    for kk in range(K):
        dw = dw + hp[:, kk:kk + T, :] * p["dw_w"][kk][None, None, :]
    dw = silu(dw + p["dw_b"])
    x = res + (dw @ p["pw2_w"] + p["pw2_b"])

    res = x
    xn = ln(x, p["ln_ff_g"], p["ln_ff_b"])
    x = res + 0.5 * (silu(xn @ p["ff_w1"] + p["ff_b1"]) @ p["ff_w2"] + p["ff_b2"])
    return ln(x, p["ln_final_g"], p["ln_final_b"])


# ---------------------------------- main ------------------------------------

class _Init:
    def __init__(self, key):
        self.key = key

    def __call__(self, shape, scale=0.1):
        self.key, sub = jax.random.split(self.key)
        return scale * jax.random.normal(sub, shape, dtype=jnp.float32)


if __name__ == "__main__":
    B, T, D, H, F, K = 2, 8, 32, 4, 64, 7   # small shapes; D = attention_dim
    dk = D // H

    init = _Init(jax.random.PRNGKey(0))

    def ln_params():
        return 1.0 + init((D,)), init((D,))

    params = {}
    params["ln_ffm_g"], params["ln_ffm_b"] = ln_params()
    params["ln_mha_g"], params["ln_mha_b"] = ln_params()
    params["ln_conv_g"], params["ln_conv_b"] = ln_params()
    params["ln_ff_g"], params["ln_ff_b"] = ln_params()
    params["ln_final_g"], params["ln_final_b"] = ln_params()

    # feed-forward (macaron + regular)
    params["ffm_w1"], params["ffm_b1"] = init((D, F)), init((F,))
    params["ffm_w2"], params["ffm_b2"] = init((F, D)), init((D,))
    params["ff_w1"], params["ff_b1"] = init((D, F)), init((F,))
    params["ff_w2"], params["ff_b2"] = init((F, D)), init((D,))

    # relative-position multi-head attention
    for n in ("q", "k", "v", "o"):
        params[f"w{n}"], params[f"b{n}"] = init((D, D)), init((D,))
    params["wpos"] = init((D, D))
    params["pos_bias_u"] = init((H, dk))
    params["pos_bias_v"] = init((H, dk))

    # convolution module
    params["pw1_w"], params["pw1_b"] = init((D, 2 * D)), init((2 * D,))
    params["dw_w"], params["dw_b"] = init((K, D)), init((D,))
    params["pw2_w"], params["pw2_b"] = init((D, D)), init((D,))

    # inputs
    kx, kp = jax.random.split(jax.random.PRNGKey(42))
    x = jax.random.normal(kx, (B, T, D), dtype=jnp.float32)
    pos_emb = 0.5 * jax.random.normal(kp, (1, 2 * T - 1, D), dtype=jnp.float32)

    out = conformer_layer(x, pos_emb, params, H, dk)
    out = jax.block_until_ready(out)

    ref = reference_forward(x, pos_emb, params, H, dk)
    assert out.shape == (B, T, D)
    assert bool(jnp.all(jnp.isfinite(out)))
    assert bool(jnp.allclose(out, ref, atol=2e-2, rtol=2e-2)), "mismatch vs reference"

    print("KERNEL_OK")
</pallas_src>

<mosaic_0001>
module attributes {stable_mosaic.version = 11 : i64} {
  func.func @_ln_ffn_kernel(%arg0: i32, %arg1: memref<16x32xf32, #tpu.memory_space<vmem>>, %arg2: memref<1x32xf32, #tpu.memory_space<vmem>>, %arg3: memref<1x32xf32, #tpu.memory_space<vmem>>, %arg4: memref<32x64xf32, #tpu.memory_space<vmem>>, %arg5: memref<1x64xf32, #tpu.memory_space<vmem>>, %arg6: memref<64x32xf32, #tpu.memory_space<vmem>>, %arg7: memref<1x32xf32, #tpu.memory_space<vmem>>, %arg8: memref<16x32xf32, #tpu.memory_space<vmem>>) attributes {dimension_semantics = [#tpu.dimension_semantics<parallel>], iteration_bounds = array<i64: 1>, scalar_prefetch = 0 : i64, scratch_operands = 0 : i64, tpu.core_type = #tpu.core_type<tc>, window_params = [{transform_indices = @transform_0, window_bounds = array<i64: 16, 32>}, {pipeline_mode = #tpu.pipeline_mode<synchronous>, transform_indices = @transform_1, window_bounds = array<i64: 1, 32>}, {pipeline_mode = #tpu.pipeline_mode<synchronous>, transform_indices = @transform_2, window_bounds = array<i64: 1, 32>}, {pipeline_mode = #tpu.pipeline_mode<synchronous>, transform_indices = @transform_3, window_bounds = array<i64: 32, 64>}, {pipeline_mode = #tpu.pipeline_mode<synchronous>, transform_indices = @transform_4, window_bounds = array<i64: 1, 64>}, {pipeline_mode = #tpu.pipeline_mode<synchronous>, transform_indices = @transform_5, window_bounds = array<i64: 64, 32>}, {pipeline_mode = #tpu.pipeline_mode<synchronous>, transform_indices = @transform_6, window_bounds = array<i64: 1, 32>}, {transform_indices = @transform_7, window_bounds = array<i64: 16, 32>}]} {
    %c0 = arith.constant 0 : index
    %c0_0 = arith.constant 0 : index
    %0 = vector.load %arg1[%c0, %c0_0] : memref<16x32xf32, #tpu.memory_space<vmem>>, vector<16x32xf32>
    %c0_1 = arith.constant 0 : index
    %c0_2 = arith.constant 0 : index
    %1 = vector.load %arg2[%c0_1, %c0_2] : memref<1x32xf32, #tpu.memory_space<vmem>>, vector<1x32xf32>
    %c0_3 = arith.constant 0 : index
    %c0_4 = arith.constant 0 : index
    %2 = vector.load %arg3[%c0_3, %c0_4] : memref<1x32xf32, #tpu.memory_space<vmem>>, vector<1x32xf32>
    %c0_5 = arith.constant 0 : index
    %c0_6 = arith.constant 0 : index
    %3 = vector.load %arg4[%c0_5, %c0_6] : memref<32x64xf32, #tpu.memory_space<vmem>>, vector<32x64xf32>
    %c0_7 = arith.constant 0 : index
    %c0_8 = arith.constant 0 : index
    %4 = vector.load %arg5[%c0_7, %c0_8] : memref<1x64xf32, #tpu.memory_space<vmem>>, vector<1x64xf32>
    %c0_9 = arith.constant 0 : index
    %c0_10 = arith.constant 0 : index
    %5 = vector.load %arg6[%c0_9, %c0_10] : memref<64x32xf32, #tpu.memory_space<vmem>>, vector<64x32xf32>
    %c0_11 = arith.constant 0 : index
    %c0_12 = arith.constant 0 : index
    %6 = vector.load %arg7[%c0_11, %c0_12] : memref<1x32xf32, #tpu.memory_space<vmem>>, vector<1x32xf32>
    %cst = arith.constant dense<0.000000e+00> : vector<16xf32>
    %7 = vector.multi_reduction <add>, %0, %cst [1] : vector<16x32xf32> to vector<16xf32>
    %8 = vector.shape_cast %7 : vector<16xf32> to vector<16x1xf32>
    %cst_13 = arith.constant 3.200000e+01 : f32
    %9 = vector.broadcast %cst_13 : f32 to vector<16x1xf32>
    %10 = arith.divf %8, %9 : vector<16x1xf32>
    %11 = vector.broadcast %10 : vector<16x1xf32> to vector<16x32xf32>
    %12 = arith.subf %0, %11 : vector<16x32xf32>
    %13 = arith.mulf %12, %12 : vector<16x32xf32>
    %cst_14 = arith.constant dense<0.000000e+00> : vector<16xf32>
    %14 = vector.multi_reduction <add>, %13, %cst_14 [1] : vector<16x32xf32> to vector<16xf32>
    %15 = vector.shape_cast %14 : vector<16xf32> to vector<16x1xf32>
    %cst_15 = arith.constant 3.200000e+01 : f32
    %16 = vector.broadcast %cst_15 : f32 to vector<16x1xf32>
    %17 = arith.divf %15, %16 : vector<16x1xf32>
    %18 = vector.broadcast %10 : vector<16x1xf32> to vector<16x32xf32>
    %19 = arith.subf %0, %18 : vector<16x32xf32>
    %cst_16 = arith.constant 9.99999974E-6 : f32
    %20 = vector.broadcast %cst_16 : f32 to vector<16x1xf32>
    %21 = arith.addf %17, %20 : vector<16x1xf32>
    %22 = math.rsqrt %21 : vector<16x1xf32>
    %23 = vector.broadcast %22 : vector<16x1xf32> to vector<16x32xf32>
    %24 = arith.mulf %19, %23 : vector<16x32xf32>
    %25 = vector.broadcast %1 : vector<1x32xf32> to vector<16x32xf32>
    %26 = arith.mulf %24, %25 : vector<16x32xf32>
    %27 = vector.broadcast %2 : vector<1x32xf32> to vector<16x32xf32>
    %28 = arith.addf %26, %27 : vector<16x32xf32>
    %cst_17 = arith.constant dense<0.000000e+00> : vector<16x64xf32>
    %29 = tpu.matmul %28, %3, %cst_17 {dimension_numbers = #tpu.dot_dimension_numbers<[1], [0], [0], [1], [0, 0, 1, 1], [], []>} : vector<16x32xf32>, vector<32x64xf32>, vector<16x64xf32> -> vector<16x64xf32>
    %30 = vector.broadcast %4 : vector<1x64xf32> to vector<16x64xf32>
    %31 = arith.addf %29, %30 : vector<16x64xf32>
    %32 = arith.negf %31 : vector<16x64xf32>
    %33 = math.exp %32 : vector<16x64xf32>
    %cst_18 = arith.constant 1.000000e+00 : f32
    %34 = vector.broadcast %cst_18 : f32 to vector<16x64xf32>
    %35 = arith.addf %34, %33 : vector<16x64xf32>
    %36 = arith.divf %34, %35 : vector<16x64xf32>
    %37 = arith.mulf %31, %36 : vector<16x64xf32>
    %cst_19 = arith.constant dense<0.000000e+00> : vector<16x32xf32>
    %38 = tpu.matmul %37, %5, %cst_19 {dimension_numbers = #tpu.dot_dimension_numbers<[1], [0], [0], [1], [0, 0, 1, 1], [], []>} : vector<16x64xf32>, vector<64x32xf32>, vector<16x32xf32> -> vector<16x32xf32>
    %39 = vector.broadcast %6 : vector<1x32xf32> to vector<16x32xf32>
    %40 = arith.addf %38, %39 : vector<16x32xf32>
    %cst_20 = arith.constant 5.000000e-01 : f32
    %41 = vector.broadcast %cst_20 : f32 to vector<16x32xf32>
    %42 = arith.mulf %41, %40 : vector<16x32xf32>
    %43 = arith.addf %0, %42 : vector<16x32xf32>
    %c0_21 = arith.constant 0 : index
    %c0_22 = arith.constant 0 : index
    %44 = vector.load %arg8[%c0_21, %c0_22] : memref<16x32xf32, #tpu.memory_space<vmem>>, vector<16x32xf32>
    tpu.vector_store %arg8[%c0_21, %c0_22], %43 {strides = array<i32>} : memref<16x32xf32, #tpu.memory_space<vmem>>, vector<16x32xf32>,
    return
  }
  func.func @transform_0(%arg0: i32) -> (i32, i32) {
    %c0_i32 = arith.constant 0 : i32
    %c0_i32_0 = arith.constant 0 : i32
    return %arg0, %c0_i32 : i32, i32
  }
  func.func @transform_1(%arg0: i32) -> (i32, i32) {
    %c0_i32 = arith.constant 0 : i32
    %c0_i32_0 = arith.constant 0 : i32
    %c0_i32_1 = arith.constant 0 : i32
    return %c0_i32, %c0_i32_0 : i32, i32
  }
  func.func @transform_2(%arg0: i32) -> (i32, i32) {
    %c0_i32 = arith.constant 0 : i32
    %c0_i32_0 = arith.constant 0 : i32
    %c0_i32_1 = arith.constant 0 : i32
    return %c0_i32, %c0_i32_0 : i32, i32
  }
  func.func @transform_3(%arg0: i32) -> (i32, i32) {
    %c0_i32 = arith.constant 0 : i32
    %c0_i32_0 = arith.constant 0 : i32
    %c0_i32_1 = arith.constant 0 : i32
    return %c0_i32, %c0_i32_0 : i32, i32
  }
  func.func @transform_4(%arg0: i32) -> (i32, i32) {
    %c0_i32 = arith.constant 0 : i32
    %c0_i32_0 = arith.constant 0 : i32
    %c0_i32_1 = arith.constant 0 : i32
    return %c0_i32, %c0_i32_0 : i32, i32
  }
  func.func @transform_5(%arg0: i32) -> (i32, i32) {
    %c0_i32 = arith.constant 0 : i32
    %c0_i32_0 = arith.constant 0 : i32
    %c0_i32_1 = arith.constant 0 : i32
    return %c0_i32, %c0_i32_0 : i32, i32
  }
  func.func @transform_6(%arg0: i32) -> (i32, i32) {
    %c0_i32 = arith.constant 0 : i32
    %c0_i32_0 = arith.constant 0 : i32
    %c0_i32_1 = arith.constant 0 : i32
    return %c0_i32, %c0_i32_0 : i32, i32
  }
  func.func @transform_7(%arg0: i32) -> (i32, i32) {
    %c0_i32 = arith.constant 0 : i32
    %c0_i32_0 = arith.constant 0 : i32
    return %arg0, %c0_i32 : i32, i32
  }
}

</mosaic_0001>

<llo_original>
// kernel: tpu_custom_call.1
$region0: #{tpu_custom_call.1}
  #allocation0 [shape = 'u32[]', space=smem, size = 0x4, offset = 0x4, fixed_abs, tag = 'smem constant byte address 0x4 - core index']
  #allocation1 [shape = 'u32[144,128]{1,0:T(1,128)}', space=vmem, size = 0x12000, scoped, tag = 'internal scratch']
  %s0 = inlined_call_operand.vmem [shape: f32[16,32], index: 0, kind: input, shape index: {}]
  %s1 = inlined_call_operand.vmem [shape: f32[1,32], index: 1, kind: input, shape index: {}]
  %s2 = inlined_call_operand.vmem [shape: f32[1,32], index: 2, kind: input, shape index: {}]
  %s3 = inlined_call_operand.vmem [shape: f32[32,64], index: 3, kind: input, shape index: {}]
  %s4 = inlined_call_operand.vmem [shape: f32[1,64], index: 4, kind: input, shape index: {}]
  %s5 = inlined_call_operand.vmem [shape: f32[64,32], index: 5, kind: input, shape index: {}]
  %s6 = inlined_call_operand.vmem [shape: f32[1,32], index: 6, kind: input, shape index: {}]
  %s7 = inlined_call_operand.hbm [shape: f32[16,32], index: 7, kind: output, shape index: {}]
  %s8 = sld [smem:[#allocation0]]
  $region38: #{tpu_custom_call.1} parent=0
    _
  %s10 = ssub.s32 1, %s8
  %s11 = scalar_select 0, %s10, %s8
  $region1: #{tpu_custom_call.1} parent=0
    #allocation2 [shape = 'u8[8192]{0}', space=vmem, size = 0x2000, scoped, tag = 'output window, operand 0, single buffered']
    #allocation3 [shape = 's32[1]{0}', space=sflag, size = 0x4, scoped, tag = 'scoped memory for tpu_custom_call.1']
    %12 = vsyncpa [#allocation3], 0
    // Predicated region
    $region2: #{tpu_custom_call.1} parent=1 // pred_check
      _
    $region3: #{tpu_custom_call.1} parent=1 // pred_check_branch
      %14 = sbr.rel (0) target = $region5
    $region4: #{tpu_custom_call.1} parent=1 // pred_region
      _
    $region5: #{tpu_custom_call.1} parent=1 // pred_fallthru
      _
    // Predicated region
    $region6: #{tpu_custom_call.1} parent=1 // pred_check
      _
    $region7: #{tpu_custom_call.1} parent=1 // pred_check_branch
      %16 = sbr.rel (0) target = $region9
    $region8: #{tpu_custom_call.1} parent=1 // pred_region
      _
    $region9: #{tpu_custom_call.1} parent=1 // pred_fallthru
      _
    // Predicated region
    $region10: #{tpu_custom_call.1} parent=1 // pred_check
      _
    $region11: #{tpu_custom_call.1} parent=1 // pred_check_branch
      %18 = sbr.rel (0) target = $region13
    $region12: #{tpu_custom_call.1} parent=1 // pred_region
      _
    $region13: #{tpu_custom_call.1} parent=1 // pred_fallthru
      _
    // Predicated region
    $region14: #{tpu_custom_call.1} parent=1 // pred_check
      _
    $region15: #{tpu_custom_call.1} parent=1 // pred_check_branch
      %20 = sbr.rel (0) target = $region17
    $region16: #{tpu_custom_call.1} parent=1 // pred_region
      _
    $region17: #{tpu_custom_call.1} parent=1 // pred_fallthru
      _
    // Predicated region
    $region18: #{tpu_custom_call.1} parent=1 // pred_check
      _
    $region19: #{tpu_custom_call.1} parent=1 // pred_check_branch
      %22 = sbr.rel (0) target = $region21
    $region20: #{tpu_custom_call.1} parent=1 // pred_region
      _
    $region21: #{tpu_custom_call.1} parent=1 // pred_fallthru
      _
    // Predicated region
    $region22: #{tpu_custom_call.1} parent=1 // pred_check
      _
    $region23: #{tpu_custom_call.1} parent=1 // pred_check_branch
      %24 = sbr.rel (0) target = $region25
    $region24: #{tpu_custom_call.1} parent=1 // pred_region
      _
    $region25: #{tpu_custom_call.1} parent=1 // pred_fallthru
      _
    // Predicated region
    $region26: #{tpu_custom_call.1} parent=1 // pred_check
      _
    $region27: #{tpu_custom_call.1} parent=1 // pred_check_branch
      %26 = sbr.rel (0) target = $region29
    $region28: #{tpu_custom_call.1} parent=1 // pred_region
      _
    $region29: #{tpu_custom_call.1} parent=1 // pred_fallthru
      _
    %v27 = vld [vmem:[%s0] sm:$0xff]
    %v28 = vld [vmem:[%s0 + $0x8] sm:$0xff]
    %v29 = vld [vmem:[%s1] sm:$0x1]
    %v30 = vld [vmem:[%s2] sm:$0x1]
    %v31 = vld [vmem:[%s3] sm:$0xff]
    %v32 = vld [vmem:[%s3 + $0x8] sm:$0xff]
    %v33 = vld [vmem:[%s3 + $0x10] sm:$0xff]
    %v34 = vld [vmem:[%s3 + $0x18] sm:$0xff]
    %v35 = vld [vmem:[%s4] sm:$0x1]
    %v36 = vld [vmem:[%s5] sm:$0xff]
    %v37 = vld [vmem:[%s5 + $0x8] sm:$0xff]
    %v38 = vld [vmem:[%s5 + $0x10] sm:$0xff]
    %v39 = vld [vmem:[%s5 + $0x18] sm:$0xff]
    %v40 = vld [vmem:[%s5 + $0x20] sm:$0xff]
    %v41 = vld [vmem:[%s5 + $0x28] sm:$0xff]
    %v42 = vld [vmem:[%s5 + $0x30] sm:$0xff]
    %v43 = vld [vmem:[%s5 + $0x38] sm:$0xff]
    %v44 = vld [vmem:[%s6] sm:$0x1]
    %vm45 = vcmask 261120
    %v46 = vsel %vm45, %v27, 0.0
    %47 = vadd.xlane.f32.xlu0 %v46
    %v48 = vpop.xlane.xlu0 %47
    %v49 = vsel %vm45, %v28, 0.0
    %50 = vadd.xlane.f32.xlu0 %v49
    %v51 = vpop.xlane.xlu0 %50
    %v52 = vrcp.pop 32.0
    %v53 = vmul.f32 %v48, %v52
    %v54 = vmul.f32 %v51, %v52
    %v55 = vsub.f32 %v27, %v53
    %v56 = vsub.f32 %v28, %v54
    %v57 = vmul.f32 %v55, %v55
    %v58 = vmul.f32 %v56, %v56
    %v59 = vsel %vm45, %v57, 0.0
    %60 = vadd.xlane.f32.xlu0 %v59
    %v61 = vpop.xlane.xlu0 %60
    %v62 = vsel %vm45, %v58, 0.0
    %63 = vadd.xlane.f32.xlu0 %v62
    %v64 = vpop.xlane.xlu0 %63
    %v65 = vmul.f32 %v61, %v52
    %v66 = vmul.f32 %v64, %v52
    %v67 = vadd.f32 %v65, 1e-05
    %v68 = vadd.f32 %v66, 1e-05
    %v69 = vrsqrt.pop %v67
    %v70 = vrsqrt.pop %v68
    %v71 = vmul.f32 %v55, %v69
    %v72 = vmul.f32 %v56, %v70
    %v74 = vlaneseq
    %v75 = vshrl.u32 %v74, 7
    %v76 = vsub.s32 0, %v75
    %v77 = vrot.slane %v29, %v76
    %v79 = vmul.f32 %v71, %v77
    %v80 = vmul.f32 %v72, %v77
    %v82 = vlaneseq
    %v83 = vshrl.u32 %v82, 7
    %v84 = vsub.s32 0, %v83
    %v85 = vrot.slane %v30, %v84
    %v87 = vadd.f32 %v79, %v85
    %v88 = vadd.f32 %v80, %v85
    %v90 = vlaneseq
    %v91 = vshrl.u32 %v90, 7
    %v92 = vsub.s32 0, %v91
    %v93 = vrot.slane %v35, %v92
    %v96 = vsel %vm45, %v87, 0
    %v99 = vsel %vm45, %v88, 0
    %101 = vmatprep.subr.mxu0 0.0
    %102 = vmatpush1.msra.mxu0 %v31
    %103 = vmatprep.subr.mxu0 0.0
    %104 = vmatpush1.msra.mxu0 %v32
    %105 = vmatprep.subr.mxu0 0.0
    %106 = vmatpush1.msra.mxu0 %v33
    %107 = vmatprep.subr.mxu0 0.0
    %108 = vmatpush1.msra.mxu0 %v34
    %109 = vmatprep.subr.mxu0 0.0
    %110 = vmatpush1.msra.mxu0 0.0
    %111 = vmatprep.subr.mxu0 0.0
    %112 = vmatpush1.msra.mxu0 0.0
    %113 = vmatprep.subr.mxu0 0.0
    %114 = vmatpush1.msra.mxu0 0.0
    %115 = vmatprep.subr.mxu0 0.0
    %116 = vmatpush1.msra.mxu0 0.0
    %117 = vmatprep.subr.mxu0 0.0
    %118 = vmatpush1.msra.mxu0 0.0
    %119 = vmatprep.subr.mxu0 0.0
    %120 = vmatpush1.msra.mxu0 0.0
    %121 = vmatprep.subr.mxu0 0.0
    %122 = vmatpush1.msra.mxu0 0.0
    %123 = vmatprep.subr.mxu0 0.0
    %124 = vmatpush1.msra.mxu0 0.0
    %125 = vmatprep.subr.mxu0 0.0
    %126 = vmatpush1.msra.mxu0 0.0
    %127 = vmatprep.subr.mxu0 0.0
    %128 = vmatpush1.msra.mxu0 0.0
    %129 = vmatprep.subr.mxu0 0.0
    %130 = vmatpush1.msra.mxu0 0.0
    %131 = vmatprep.subr.mxu0 0.0
    %132 = vmatpush1.msra.mxu0 0.0
    %133 = vmatprep.subr.mxu0 0.0
    %134 = vmatpush1.msra.mxu0 0.0
    %135 = vmatprep.subr.mxu0 0.0
    %136 = vmatpush1.msra.mxu0 0.0
    %137 = vmatprep.subr.mxu0 0.0
    %138 = vmatpush1.msra.mxu0 0.0
    %139 = vmatprep.subr.mxu0 0.0
    %140 = vmatpush1.msra.mxu0 0.0
    %141 = vmatprep.subr.mxu0 0.0
    %142 = vmatpush1.msra.mxu0 0.0
    %143 = vmatprep.subr.mxu0 0.0
    %144 = vmatpush1.msra.mxu0 0.0
    %145 = vmatprep.subr.mxu0 0.0
    %146 = vmatpush1.msra.mxu0 0.0
    %147 = vmatprep.subr.mxu0 0.0
    %148 = vmatpush1.msra.mxu0 0.0
    %149 = vmatprep.subr.mxu0 0.0
    %150 = vmatpush1.msra.mxu0 0.0
    %151 = vmatprep.subr.mxu0 0.0
    %152 = vmatpush1.msra.mxu0 0.0
    %153 = vmatprep.subr.mxu0 0.0
    %154 = vmatpush1.msra.mxu0 0.0
    %155 = vmatprep.subr.mxu0 0.0
    %156 = vmatpush1.msra.mxu0 0.0
    %157 = vmatprep.subr.mxu0 0.0
    %158 = vmatpush1.msra.mxu0 0.0
    %159 = vmatprep.subr.mxu0 0.0
    %160 = vmatpush1.msra.mxu0 0.0
    %161 = vmatprep.subr.mxu0 0.0
    %162 = vmatpush1.msra.mxu0 0.0
    %163 = vmatprep.subr.mxu0 0.0
    %164 = vmatpush1.msra.mxu0 0.0
    %165 = vmatprep.mubr.f32.mxu0 0.0
    %166 = vmatmul.mubr.f32.gmra.mrb[0].mxu0 %v96
    %v167 = vpop.f32.mrb[0].mxu0
    %v168 = vadd.f32 %v93, %v167
    %v169 = vpop.f32.mrb[0].mxu0
    %170 = vmatprep.mubr.f32.mxu0 0.0
    %171 = vmatmul.mubr.f32.gmra.mrb[0].mxu0 %v99
    %v172 = vpop.f32.mrb[0].mxu0
    %v173 = vadd.f32 %v93, %v172
    %v174 = vpop.f32.mrb[0].mxu0
    %175 = vdwg.mxu0
    %v176 = vxor.u32 %v168, 2147483648
    %v177 = vxor.u32 %v173, 2147483648
    %v178 = vmul.f32 %v176, 1.442695
    %v179 = vpow.pop %v178
    %v180 = vmul.f32 %v177, 1.442695
    %v181 = vpow.pop %v180
    %v182 = vadd.f32 %v179, 1.0
    %v183 = vadd.f32 %v181, 1.0
    %v184 = vrcp.pop %v182
    %v185 = vmul.f32 1.0, %v184
    %v186 = vrcp.pop %v183
    %v187 = vmul.f32 1.0, %v186
    %v188 = vmul.f32 %v168, %v185
    %v189 = vmul.f32 %v173, %v187
    %v191 = vlaneseq
    %v192 = vshrl.u32 %v191, 7
    %v193 = vsub.s32 0, %v192
    %v194 = vrot.slane %v44, %v193
    %vm196 = vcmask 523264
    %v198 = vsel %vm196, %v188, 0
    %v201 = vsel %vm196, %v189, 0
    %203 = vmatprep.subr.mxu0 0.0
    %204 = vmatpush1.msra.mxu0 %v36
    %205 = vmatprep.subr.mxu0 0.0
    %206 = vmatpush1.msra.mxu0 %v37
    %207 = vmatprep.subr.mxu0 0.0
    %208 = vmatpush1.msra.mxu0 %v38
    %209 = vmatprep.subr.mxu0 0.0
    %210 = vmatpush1.msra.mxu0 %v39
    %211 = vmatprep.subr.mxu0 0.0
    %212 = vmatpush1.msra.mxu0 %v40
    %213 = vmatprep.subr.mxu0 0.0
    %214 = vmatpush1.msra.mxu0 %v41
    %215 = vmatprep.subr.mxu0 0.0
    %216 = vmatpush1.msra.mxu0 %v42
    %217 = vmatprep.subr.mxu0 0.0
    %218 = vmatpush1.msra.mxu0 %v43
    %219 = vmatprep.subr.mxu0 0.0
    %220 = vmatpush1.msra.mxu0 0.0
    %221 = vmatprep.subr.mxu0 0.0
    %222 = vmatpush1.msra.mxu0 0.0
    %223 = vmatprep.subr.mxu0 0.0
    %224 = vmatpush1.msra.mxu0 0.0
    %225 = vmatprep.subr.mxu0 0.0
    %226 = vmatpush1.msra.mxu0 0.0
    %227 = vmatprep.subr.mxu0 0.0
    %228 = vmatpush1.msra.mxu0 0.0
    %229 = vmatprep.subr.mxu0 0.0
    %230 = vmatpush1.msra.mxu0 0.0
    %231 = vmatprep.subr.mxu0 0.0
    %232 = vmatpush1.msra.mxu0 0.0
    %233 = vmatprep.subr.mxu0 0.0
    %234 = vmatpush1.msra.mxu0 0.0
    %235 = vmatprep.subr.mxu0 0.0
    %236 = vmatpush1.msra.mxu0 0.0
    %237 = vmatprep.subr.mxu0 0.0
    %238 = vmatpush1.msra.mxu0 0.0
    %239 = vmatprep.subr.mxu0 0.0
    %240 = vmatpush1.msra.mxu0 0.0
    %241 = vmatprep.subr.mxu0 0.0
    %242 = vmatpush1.msra.mxu0 0.0
    %243 = vmatprep.subr.mxu0 0.0
    %244 = vmatpush1.msra.mxu0 0.0
    %245 = vmatprep.subr.mxu0 0.0
    %246 = vmatpush1.msra.mxu0 0.0
    %247 = vmatprep.subr.mxu0 0.0
    %248 = vmatpush1.msra.mxu0 0.0
    %249 = vmatprep.subr.mxu0 0.0
    %250 = vmatpush1.msra.mxu0 0.0
    %251 = vmatprep.subr.mxu0 0.0
    %252 = vmatpush1.msra.mxu0 0.0
    %253 = vmatprep.subr.mxu0 0.0
    %254 = vmatpush1.msra.mxu0 0.0
    %255 = vmatprep.subr.mxu0 0.0
    %256 = vmatpush1.msra.mxu0 0.0
    %257 = vmatprep.subr.mxu0 0.0
    %258 = vmatpush1.msra.mxu0 0.0
    %259 = vmatprep.subr.mxu0 0.0
    %260 = vmatpush1.msra.mxu0 0.0
    %261 = vmatprep.subr.mxu0 0.0
    %262 = vmatpush1.msra.mxu0 0.0
    %263 = vmatprep.subr.mxu0 0.0
    %264 = vmatpush1.msra.mxu0 0.0
    %265 = vmatprep.subr.mxu0 0.0
    %266 = vmatpush1.msra.mxu0 0.0
    %267 = vmatprep.mubr.f32.mxu0 0.0
    %268 = vmatmul.mubr.f32.gmra.mrb[0].mxu0 %v198
    %v269 = vpop.f32.mrb[0].mxu0
    %v270 = vadd.f32 %v194, %v269
    %v271 = vpop.f32.mrb[0].mxu0
    %272 = vmatprep.mubr.f32.mxu0 0.0
    %273 = vmatmul.mubr.f32.gmra.mrb[0].mxu0 %v201
    %v274 = vpop.f32.mrb[0].mxu0
    %v275 = vadd.f32 %v194, %v274
    %v276 = vpop.f32.mrb[0].mxu0
    %277 = vdwg.mxu0
    %v278 = vmul.f32 %v270, 0.5
    %v279 = vmul.f32 %v275, 0.5
    %v280 = vadd.f32 %v27, %v278
    %v281 = vadd.f32 %v28, %v279
    %282 = vst.msk [vmem:[#allocation2] sm:$0xff] %vm45, %v280
    %283 = vst.msk [vmem:[#allocation2 + $0x8] sm:$0xff] %vm45, %v281
    // Predicated region
    $region30: #{tpu_custom_call.1} parent=1 // pred_check
      _
    $region31: #{tpu_custom_call.1} parent=1 // pred_check_branch
      %285 = sbr.rel (0) target = $region33
    $region32: #{tpu_custom_call.1} parent=1 // pred_region
      %s287 = ssub.s32 256, 256
      %288 = vsyncadd [#allocation3], %s287
      %s289 = sshll.u32 [#allocation2], 4
      %s290 = int_to_ptr.vmem [resolvable:$true] %s289
      %295 = dma.vmem_to_hbm [thread:$0]  %s290, 256, %s7, [#allocation3], 128, 128, 8
    $region33: #{tpu_custom_call.1} parent=1 // pred_fallthru
      _
    // Predicated region
    $region34: #{tpu_custom_call.1} parent=1 // pred_check
      _
    $region35: #{tpu_custom_call.1} parent=1 // pred_check_branch
      %297 = sbr.rel (0) target = $region37
    $region36: #{tpu_custom_call.1} parent=1 // pred_region
      %298 = dma.done [#allocation3], 256
    $region37: #{tpu_custom_call.1} parent=1 // pred_fallthru
      _
    %299 = vsyncpa [#allocation3], 1

</llo_original>
